<compile_context>
chip_gen: v5e
topology: v5e:2x2
jax: 0.10.0
libtpu: 0.0.40
codegen_flags: <defaults>
</compile_context>

<pallas_src>
import functools

import jax
import jax.numpy as jnp
from jax import lax
from jax.experimental import pallas as pl
from jax.experimental.pallas import tpu as pltpu


def _encoder_kernel(t_ref, a_ref, w_ref, out_ref, *, vt, r):
    # t_ref, a_ref: [tile_rows, r] int32   (node type / attribute ids, grouped)
    # w_ref:        [r, k_pad, lane_w] f32 (block-shifted fused tables)
    # out_ref:      [tile_rows, lane_w] f32 (lane_w = r * emb_dim)
    tile_rows, lane_w = out_ref.shape
    k_pad = w_ref.shape[1]

    iota = lax.broadcasted_iota(jnp.int32, (tile_rows, k_pad), 1)

    acc = None
    for j in range(r):  # static unroll (r = 128 // emb_dim, e.g. 4)
        tj = t_ref[:, j:j + 1]                 # [tile_rows, 1]
        aj = a_ref[:, j:j + 1] + vt            # offset attrs into fused vocab
        # Two-hot row per node: 1.0 at lanes type_id and vt+attr_id.
        oh = ((iota == tj) | (iota == aj)).astype(jnp.float32)
        contrib = jnp.dot(oh, w_ref[j], preferred_element_type=jnp.float32)
        acc = contrib if acc is None else acc + contrib
    out_ref[...] = acc


def ast_node_encoder2(x, depth, type_table, attr_table, max_depth, *, tile_n=512):
    """Pallas implementation of ASTNodeEncoder2.forward.

    Returns (embedding [N, D] f32, clamped_depth). PyTorch clamps `depth`
    in place; JAX arrays are immutable so the clamped depth is returned.
    """
    n = x.shape[0]
    vt, d = type_table.shape
    va = attr_table.shape[0]

    clamped_depth = jnp.minimum(depth, max_depth)

    # Lane packing: r nodes per 128-wide output row when emb_dim divides 128.
    if d < 128 and 128 % d == 0:
        r = 128 // d
    else:
        r = 1  # emb_dim >= 128 (or awkward): store [tile_n, d] blocks directly.
    lane_w = r * d

    # Tile over nodes; keep tile_rows = tile_n // r a multiple of 8 sublanes.
    tile_n = max(tile_n, 8 * r)
    tile_n = ((tile_n + 8 * r - 1) // (8 * r)) * (8 * r)
    n_pad = ((n + tile_n - 1) // tile_n) * tile_n
    rows = n_pad // r
    tile_rows = tile_n // r
    grid = (rows // tile_rows,)

    # Fused (type ++ attr) table, zero-padded to a K multiple of 128.
    k_pad = ((vt + va + 127) // 128) * 128
    fused = jnp.zeros((k_pad, d), jnp.float32)
    fused = fused.at[:vt].set(type_table.astype(jnp.float32))
    fused = fused.at[vt:vt + va].set(attr_table.astype(jnp.float32))

    # Block-shifted weight copies so node j of each group lands in lanes
    # [j*d, (j+1)*d) of the 128-wide output row.
    if r > 1:
        w = jnp.zeros((r, k_pad, lane_w), jnp.float32)
        for j in range(r):
            w = w.at[j, :, j * d:(j + 1) * d].set(fused)
    else:
        w = fused[None]  # [1, k_pad, d]

    # Split + pad + group the indices in the wrapper (index 0 for pad rows).
    t_idx = jnp.zeros((n_pad,), jnp.int32).at[:n].set(x[:, 0].astype(jnp.int32))
    a_idx = jnp.zeros((n_pad,), jnp.int32).at[:n].set(x[:, 1].astype(jnp.int32))
    t_idx = t_idx.reshape(rows, r)
    a_idx = a_idx.reshape(rows, r)

    kernel = functools.partial(_encoder_kernel, vt=vt, r=r)

    cost = pl.CostEstimate(
        flops=2 * rows * k_pad * lane_w,
        transcendentals=0,
        bytes_accessed=4 * rows * lane_w + 8 * n_pad + 4 * r * k_pad * lane_w,
    )

    out = pl.pallas_call(
        kernel,
        out_shape=jax.ShapeDtypeStruct((rows, lane_w), jnp.float32),
        grid_spec=pltpu.PrefetchScalarGridSpec(
            num_scalar_prefetch=0,
            grid=grid,
            in_specs=[
                pl.BlockSpec((tile_rows, r), lambda i: (i, 0)),
                pl.BlockSpec((tile_rows, r), lambda i: (i, 0)),
                pl.BlockSpec((r, k_pad, lane_w), lambda i: (0, 0, 0)),
            ],
            out_specs=pl.BlockSpec((tile_rows, lane_w), lambda i: (i, 0)),
        ),
        compiler_params=pltpu.CompilerParams(
            dimension_semantics=("parallel",)),
        cost_estimate=cost,
    )(t_idx, a_idx, w)

    # [rows, r*d] row-major is bit-identical to [n_pad, d]; slice off padding.
    emb = out.reshape(n_pad, d)[:n]
    return emb, clamped_depth


def _reference(x, depth, type_table, attr_table, max_depth):
    emb = type_table[x[:, 0]] + attr_table[x[:, 1]]
    return emb, jnp.minimum(depth, max_depth)


if __name__ == "__main__":
    # Small shapes consistent with the module __init__.
    emb_dim = 32
    num_nodetypes = 8
    num_nodeattributes = 16
    max_depth = 20
    num_nodes = 10  # deliberately not a multiple of the tile -> exercises padding

    key = jax.random.PRNGKey(0)
    k1, k2, k3, k4, k5 = jax.random.split(key, 5)

    type_table = jax.random.normal(k1, (num_nodetypes, emb_dim), dtype=jnp.float32)
    attr_table = jax.random.normal(k2, (num_nodeattributes, emb_dim), dtype=jnp.float32)

    type_ids = jax.random.randint(k3, (num_nodes, 1), 0, num_nodetypes, dtype=jnp.int32)
    attr_ids = jax.random.randint(k4, (num_nodes, 1), 0, num_nodeattributes, dtype=jnp.int32)
    x = jnp.concatenate([type_ids, attr_ids], axis=1)          # [N, 2] int32
    depth = jax.random.randint(k5, (num_nodes,), 0, 40, dtype=jnp.int32)

    emb, clamped = ast_node_encoder2(x, depth, type_table, attr_table, max_depth)
    emb = jax.block_until_ready(emb)
    clamped = jax.block_until_ready(clamped)

    ref_emb, ref_clamped = _reference(x, depth, type_table, attr_table, max_depth)
    assert emb.shape == (num_nodes, emb_dim)
    assert jnp.allclose(emb, ref_emb, atol=1e-5, rtol=1e-5)
    assert jnp.array_equal(clamped, ref_clamped)

    print("KERNEL_OK")
</pallas_src>

<mosaic_0001>
module attributes {stable_mosaic.version = 11 : i64} {
  func.func @_encoder_kernel(%arg0: i32, %arg1: memref<128x4xi32, #tpu.memory_space<vmem>>, %arg2: memref<128x4xi32, #tpu.memory_space<vmem>>, %arg3: memref<4x128x128xf32, #tpu.memory_space<vmem>>, %arg4: memref<128x128xf32, #tpu.memory_space<vmem>>) attributes {dimension_semantics = [#tpu.dimension_semantics<parallel>], iteration_bounds = array<i64: 1>, scalar_prefetch = 0 : i64, scratch_operands = 0 : i64, tpu.core_type = #tpu.core_type<tc>, window_params = [{transform_indices = @transform_0, window_bounds = array<i64: 128, 4>}, {transform_indices = @transform_1, window_bounds = array<i64: 128, 4>}, {pipeline_mode = #tpu.pipeline_mode<synchronous>, transform_indices = @transform_2, window_bounds = array<i64: 4, 128, 128>}, {transform_indices = @transform_3, window_bounds = array<i64: 128, 128>}]} {
    %0 = tpu.iota {dimensions = array<i32: 1>} : vector<128x128xi32>
    %c0 = arith.constant 0 : index
    %c0_0 = arith.constant 0 : index
    %1 = vector.load %arg1[%c0, %c0_0] : memref<128x4xi32, #tpu.memory_space<vmem>>, vector<128x1xi32>
    %c0_1 = arith.constant 0 : index
    %c0_2 = arith.constant 0 : index
    %2 = vector.load %arg2[%c0_1, %c0_2] : memref<128x4xi32, #tpu.memory_space<vmem>>, vector<128x1xi32>
    %c8_i32 = arith.constant 8 : i32
    %3 = vector.broadcast %c8_i32 : i32 to vector<128x1xi32>
    %4 = arith.addi %2, %3 : vector<128x1xi32>
    %5 = vector.broadcast %1 : vector<128x1xi32> to vector<128x128xi32>
    %6 = arith.cmpi eq, %0, %5 : vector<128x128xi32>
    %7 = vector.broadcast %4 : vector<128x1xi32> to vector<128x128xi32>
    %8 = arith.cmpi eq, %0, %7 : vector<128x128xi32>
    %9 = arith.ori %6, %8 : vector<128x128xi1>
    %10 = arith.extui %9 : vector<128x128xi1> to vector<128x128xi32>
    %11 = arith.sitofp %10 : vector<128x128xi32> to vector<128x128xf32>
    %c0_3 = arith.constant 0 : index
    %c0_4 = arith.constant 0 : index
    %c0_5 = arith.constant 0 : index
    %12 = vector.load %arg3[%c0_3, %c0_4, %c0_5] : memref<4x128x128xf32, #tpu.memory_space<vmem>>, vector<1x128x128xf32>
    %13 = vector.shape_cast %12 : vector<1x128x128xf32> to vector<128x128xf32>
    %cst = arith.constant dense<0.000000e+00> : vector<128x128xf32>
    %14 = tpu.matmul %11, %13, %cst {dimension_numbers = #tpu.dot_dimension_numbers<[1], [0], [0], [1], [0, 0, 1, 1], [], []>} : vector<128x128xf32>, vector<128x128xf32>, vector<128x128xf32> -> vector<128x128xf32>
    %c0_6 = arith.constant 0 : index
    %c1 = arith.constant 1 : index
    %15 = vector.load %arg1[%c0_6, %c1] : memref<128x4xi32, #tpu.memory_space<vmem>>, vector<128x1xi32>
    %c0_7 = arith.constant 0 : index
    %c1_8 = arith.constant 1 : index
    %16 = vector.load %arg2[%c0_7, %c1_8] : memref<128x4xi32, #tpu.memory_space<vmem>>, vector<128x1xi32>
    %c8_i32_9 = arith.constant 8 : i32
    %17 = vector.broadcast %c8_i32_9 : i32 to vector<128x1xi32>
    %18 = arith.addi %16, %17 : vector<128x1xi32>
    %19 = vector.broadcast %15 : vector<128x1xi32> to vector<128x128xi32>
    %20 = arith.cmpi eq, %0, %19 : vector<128x128xi32>
    %21 = vector.broadcast %18 : vector<128x1xi32> to vector<128x128xi32>
    %22 = arith.cmpi eq, %0, %21 : vector<128x128xi32>
    %23 = arith.ori %20, %22 : vector<128x128xi1>
    %24 = arith.extui %23 : vector<128x128xi1> to vector<128x128xi32>
    %25 = arith.sitofp %24 : vector<128x128xi32> to vector<128x128xf32>
    %c1_10 = arith.constant 1 : index
    %c0_11 = arith.constant 0 : index
    %c0_12 = arith.constant 0 : index
    %26 = vector.load %arg3[%c1_10, %c0_11, %c0_12] : memref<4x128x128xf32, #tpu.memory_space<vmem>>, vector<1x128x128xf32>
    %27 = vector.shape_cast %26 : vector<1x128x128xf32> to vector<128x128xf32>
    %cst_13 = arith.constant dense<0.000000e+00> : vector<128x128xf32>
    %28 = tpu.matmul %25, %27, %cst_13 {dimension_numbers = #tpu.dot_dimension_numbers<[1], [0], [0], [1], [0, 0, 1, 1], [], []>} : vector<128x128xf32>, vector<128x128xf32>, vector<128x128xf32> -> vector<128x128xf32>
    %29 = arith.addf %14, %28 : vector<128x128xf32>
    %c0_14 = arith.constant 0 : index
    %c2 = arith.constant 2 : index
    %30 = vector.load %arg1[%c0_14, %c2] : memref<128x4xi32, #tpu.memory_space<vmem>>, vector<128x1xi32>
    %c0_15 = arith.constant 0 : index
    %c2_16 = arith.constant 2 : index
    %31 = vector.load %arg2[%c0_15, %c2_16] : memref<128x4xi32, #tpu.memory_space<vmem>>, vector<128x1xi32>
    %c8_i32_17 = arith.constant 8 : i32
    %32 = vector.broadcast %c8_i32_17 : i32 to vector<128x1xi32>
    %33 = arith.addi %31, %32 : vector<128x1xi32>
    %34 = vector.broadcast %30 : vector<128x1xi32> to vector<128x128xi32>
    %35 = arith.cmpi eq, %0, %34 : vector<128x128xi32>
    %36 = vector.broadcast %33 : vector<128x1xi32> to vector<128x128xi32>
    %37 = arith.cmpi eq, %0, %36 : vector<128x128xi32>
    %38 = arith.ori %35, %37 : vector<128x128xi1>
    %39 = arith.extui %38 : vector<128x128xi1> to vector<128x128xi32>
    %40 = arith.sitofp %39 : vector<128x128xi32> to vector<128x128xf32>
    %c2_18 = arith.constant 2 : index
    %c0_19 = arith.constant 0 : index
    %c0_20 = arith.constant 0 : index
    %41 = vector.load %arg3[%c2_18, %c0_19, %c0_20] : memref<4x128x128xf32, #tpu.memory_space<vmem>>, vector<1x128x128xf32>
    %42 = vector.shape_cast %41 : vector<1x128x128xf32> to vector<128x128xf32>
    %cst_21 = arith.constant dense<0.000000e+00> : vector<128x128xf32>
    %43 = tpu.matmul %40, %42, %cst_21 {dimension_numbers = #tpu.dot_dimension_numbers<[1], [0], [0], [1], [0, 0, 1, 1], [], []>} : vector<128x128xf32>, vector<128x128xf32>, vector<128x128xf32> -> vector<128x128xf32>
    %44 = arith.addf %29, %43 : vector<128x128xf32>
    %c0_22 = arith.constant 0 : index
    %c3 = arith.constant 3 : index
    %45 = vector.load %arg1[%c0_22, %c3] : memref<128x4xi32, #tpu.memory_space<vmem>>, vector<128x1xi32>
    %c0_23 = arith.constant 0 : index
    %c3_24 = arith.constant 3 : index
    %46 = vector.load %arg2[%c0_23, %c3_24] : memref<128x4xi32, #tpu.memory_space<vmem>>, vector<128x1xi32>
    %c8_i32_25 = arith.constant 8 : i32
    %47 = vector.broadcast %c8_i32_25 : i32 to vector<128x1xi32>
    %48 = arith.addi %46, %47 : vector<128x1xi32>
    %49 = vector.broadcast %45 : vector<128x1xi32> to vector<128x128xi32>
    %50 = arith.cmpi eq, %0, %49 : vector<128x128xi32>
    %51 = vector.broadcast %48 : vector<128x1xi32> to vector<128x128xi32>
    %52 = arith.cmpi eq, %0, %51 : vector<128x128xi32>
    %53 = arith.ori %50, %52 : vector<128x128xi1>
    %54 = arith.extui %53 : vector<128x128xi1> to vector<128x128xi32>
    %55 = arith.sitofp %54 : vector<128x128xi32> to vector<128x128xf32>
    %c3_26 = arith.constant 3 : index
    %c0_27 = arith.constant 0 : index
    %c0_28 = arith.constant 0 : index
    %56 = vector.load %arg3[%c3_26, %c0_27, %c0_28] : memref<4x128x128xf32, #tpu.memory_space<vmem>>, vector<1x128x128xf32>
    %57 = vector.shape_cast %56 : vector<1x128x128xf32> to vector<128x128xf32>
    %cst_29 = arith.constant dense<0.000000e+00> : vector<128x128xf32>
    %58 = tpu.matmul %55, %57, %cst_29 {dimension_numbers = #tpu.dot_dimension_numbers<[1], [0], [0], [1], [0, 0, 1, 1], [], []>} : vector<128x128xf32>, vector<128x128xf32>, vector<128x128xf32> -> vector<128x128xf32>
    %59 = arith.addf %44, %58 : vector<128x128xf32>
    %c0_30 = arith.constant 0 : index
    %c0_31 = arith.constant 0 : index
    %60 = vector.load %arg4[%c0_30, %c0_31] : memref<128x128xf32, #tpu.memory_space<vmem>>, vector<128x128xf32>
    tpu.vector_store %arg4[%c0_30, %c0_31], %59 {strides = array<i32>} : memref<128x128xf32, #tpu.memory_space<vmem>>, vector<128x128xf32>,
    return
  }
  func.func @transform_0(%arg0: i32) -> (i32, i32) {
    %c0_i32 = arith.constant 0 : i32
    %c0_i32_0 = arith.constant 0 : i32
    return %arg0, %c0_i32 : i32, i32
  }
  func.func @transform_1(%arg0: i32) -> (i32, i32) {
    %c0_i32 = arith.constant 0 : i32
    %c0_i32_0 = arith.constant 0 : i32
    return %arg0, %c0_i32 : i32, i32
  }
  func.func @transform_2(%arg0: i32) -> (i32, i32, i32) {
    %c0_i32 = arith.constant 0 : i32
    %c0_i32_0 = arith.constant 0 : i32
    %c0_i32_1 = arith.constant 0 : i32
    %c0_i32_2 = arith.constant 0 : i32
    return %c0_i32, %c0_i32_0, %c0_i32_1 : i32, i32, i32
  }
  func.func @transform_3(%arg0: i32) -> (i32, i32) {
    %c0_i32 = arith.constant 0 : i32
    %c0_i32_0 = arith.constant 0 : i32
    return %arg0, %c0_i32 : i32, i32
  }
}

</mosaic_0001>

<llo_original>
// kernel: tpu_custom_call.1
$region0: #{tpu_custom_call.1}
  #allocation0 [shape = 'u32[]', space=smem, size = 0x4, offset = 0x4, fixed_abs, tag = 'smem constant byte address 0x4 - core index']
  #allocation1 [shape = 'u32[72,128]{1,0:T(1,128)}', space=vmem, size = 0x9000, scoped, tag = 'internal scratch']
  %s0 = inlined_call_operand.vmem [shape: s32[128,4], index: 0, kind: input, shape index: {}]
  %s1 = inlined_call_operand.vmem [shape: s32[128,4], index: 1, kind: input, shape index: {}]
  %s2 = inlined_call_operand.hbm [shape: f32[4,128,128], index: 2, kind: input, shape index: {}]
  %s3 = inlined_call_operand.hbm [shape: f32[128,128], index: 3, kind: output, shape index: {}]
  %s4 = sld [smem:[#allocation0]]
  $region26: #{tpu_custom_call.1} parent=0
    _
  %s6 = ssub.s32 1, %s4
  %s7 = scalar_select 0, %s6, %s4
  $region1: #{tpu_custom_call.1} parent=0
    #allocation2 [shape = 'u8[262144]{0}', space=vmem, size = 0x40000, scoped, tag = 'input window, operand 2, single buffered']
    #allocation3 [shape = 's32[1]{0}', space=sflag, size = 0x4, scoped, tag = 'scoped memory for tpu_custom_call.1']
    #allocation4 [shape = 's32[1]{0}', space=sflag, size = 0x4, scoped, tag = 'scoped memory for tpu_custom_call.1']
    #allocation5 [shape = 'u8[65536]{0}', space=vmem, size = 0x10000, scoped, tag = 'output window, operand 0, single buffered']
    %8 = vsyncpa [#allocation3], 0
    %9 = vsyncpa [#allocation4], 0
    // Predicated region
    $region2: #{tpu_custom_call.1} parent=1 // pred_check
      _
    $region3: #{tpu_custom_call.1} parent=1 // pred_check_branch
      %11 = sbr.rel (0) target = $region5
    $region4: #{tpu_custom_call.1} parent=1 // pred_region
      _
    $region5: #{tpu_custom_call.1} parent=1 // pred_fallthru
      _
    // Predicated region
    $region6: #{tpu_custom_call.1} parent=1 // pred_check
      _
    $region7: #{tpu_custom_call.1} parent=1 // pred_check_branch
      %13 = sbr.rel (0) target = $region9
    $region8: #{tpu_custom_call.1} parent=1 // pred_region
      _
    $region9: #{tpu_custom_call.1} parent=1 // pred_fallthru
      _
    // Predicated region
    $region10: #{tpu_custom_call.1} parent=1 // pred_check
      _
    $region11: #{tpu_custom_call.1} parent=1 // pred_check_branch
      %15 = sbr.rel (0) target = $region13
    $region12: #{tpu_custom_call.1} parent=1 // pred_region
      %17 = vsyncadd [#allocation3], 0
      %s18 = sshll.u32 %s2, 4
      %s19 = int_to_ptr.hbm [resolvable:$true] %s18
      %s20 = sshll.u32 [#allocation2], 4
      %s21 = int_to_ptr.vmem [resolvable:$true] %s20
      %26 = dma.hbm_to_vmem [thread:$0]  %s19, 8192, %s21, [#allocation3], 128, 128, 8
    $region13: #{tpu_custom_call.1} parent=1 // pred_fallthru
      _
    // Predicated region
    $region14: #{tpu_custom_call.1} parent=1 // pred_check
      _
    $region15: #{tpu_custom_call.1} parent=1 // pred_check_branch
      %28 = sbr.rel (0) target = $region17
    $region16: #{tpu_custom_call.1} parent=1 // pred_region
      %30 = dma.done [#allocation3], 8192
    $region17: #{tpu_custom_call.1} parent=1 // pred_fallthru
      _
    %v31 = vlaneseq
    %v32 = vand.u32 %v31, 127
    %v33 = vld [vmem:[%s0] sm:$0xff]
    %v34 = vld [vmem:[%s0 + $0x8] sm:$0xff]
    %v35 = vld [vmem:[%s0 + $0x10] sm:$0xff]
    %v36 = vld [vmem:[%s0 + $0x18] sm:$0xff]
    %v37 = vld [vmem:[%s0 + $0x20] sm:$0xff]
    %v38 = vld [vmem:[%s0 + $0x28] sm:$0xff]
    %v39 = vld [vmem:[%s0 + $0x30] sm:$0xff]
    %v40 = vld [vmem:[%s0 + $0x38] sm:$0xff]
    %v41 = vld [vmem:[%s0 + $0x40] sm:$0xff]
    %v42 = vld [vmem:[%s0 + $0x48] sm:$0xff]
    %v43 = vld [vmem:[%s0 + $0x50] sm:$0xff]
    %v44 = vld [vmem:[%s0 + $0x58] sm:$0xff]
    %v45 = vld [vmem:[%s0 + $0x60] sm:$0xff]
    %v46 = vld [vmem:[%s0 + $0x68] sm:$0xff]
    %v47 = vld [vmem:[%s0 + $0x70] sm:$0xff]
    %v48 = vld [vmem:[%s0 + $0x78] sm:$0xff]
    %v49 = vld [vmem:[%s1] sm:$0xff]
    %v50 = vld [vmem:[%s1 + $0x8] sm:$0xff]
    %v51 = vld [vmem:[%s1 + $0x10] sm:$0xff]
    %v52 = vld [vmem:[%s1 + $0x18] sm:$0xff]
    %v53 = vld [vmem:[%s1 + $0x20] sm:$0xff]
    %v54 = vld [vmem:[%s1 + $0x28] sm:$0xff]
    %v55 = vld [vmem:[%s1 + $0x30] sm:$0xff]
    %v56 = vld [vmem:[%s1 + $0x38] sm:$0xff]
    %v57 = vld [vmem:[%s1 + $0x40] sm:$0xff]
    %v58 = vld [vmem:[%s1 + $0x48] sm:$0xff]
    %v59 = vld [vmem:[%s1 + $0x50] sm:$0xff]
    %v60 = vld [vmem:[%s1 + $0x58] sm:$0xff]
    %v61 = vld [vmem:[%s1 + $0x60] sm:$0xff]
    %v62 = vld [vmem:[%s1 + $0x68] sm:$0xff]
    %v63 = vld [vmem:[%s1 + $0x70] sm:$0xff]
    %v64 = vld [vmem:[%s1 + $0x78] sm:$0xff]
    %v65 = vadd.s32 %v49, 8
    %v66 = vadd.s32 %v50, 8
    %v67 = vadd.s32 %v51, 8
    %v68 = vadd.s32 %v52, 8
    %v69 = vadd.s32 %v53, 8
    %v70 = vadd.s32 %v54, 8
    %v71 = vadd.s32 %v55, 8
    %v72 = vadd.s32 %v56, 8
    %v73 = vadd.s32 %v57, 8
    %v74 = vadd.s32 %v58, 8
    %v75 = vadd.s32 %v59, 8
    %v76 = vadd.s32 %v60, 8
    %v77 = vadd.s32 %v61, 8
    %v78 = vadd.s32 %v62, 8
    %v79 = vadd.s32 %v63, 8
    %v80 = vadd.s32 %v64, 8
    %81 = vset.pattern.permute.xlu0 0
    %82 = vperm.xlu0 %81, %v33
    %v83 = vpop.permute.xlu0 %82
    %84 = vset.pattern.permute.xlu0 0
    %85 = vperm.xlu0 %84, %v34
    %v86 = vpop.permute.xlu0 %85
    %87 = vset.pattern.permute.xlu0 0
    %88 = vperm.xlu0 %87, %v35
    %v89 = vpop.permute.xlu0 %88
    %90 = vset.pattern.permute.xlu0 0
    %91 = vperm.xlu0 %90, %v36
    %v92 = vpop.permute.xlu0 %91
    %93 = vset.pattern.permute.xlu0 0
    %94 = vperm.xlu0 %93, %v37
    %v95 = vpop.permute.xlu0 %94
    %96 = vset.pattern.permute.xlu0 0
    %97 = vperm.xlu0 %96, %v38
    %v98 = vpop.permute.xlu0 %97
    %99 = vset.pattern.permute.xlu0 0
    %100 = vperm.xlu0 %99, %v39
    %v101 = vpop.permute.xlu0 %100
    %102 = vset.pattern.permute.xlu0 0
    %103 = vperm.xlu0 %102, %v40
    %v104 = vpop.permute.xlu0 %103
    %105 = vset.pattern.permute.xlu0 0
    %106 = vperm.xlu0 %105, %v41
    %v107 = vpop.permute.xlu0 %106
    %108 = vset.pattern.permute.xlu0 0
    %109 = vperm.xlu0 %108, %v42
    %v110 = vpop.permute.xlu0 %109
    %111 = vset.pattern.permute.xlu0 0
    %112 = vperm.xlu0 %111, %v43
    %v113 = vpop.permute.xlu0 %112
    %114 = vset.pattern.permute.xlu0 0
    %115 = vperm.xlu0 %114, %v44
    %v116 = vpop.permute.xlu0 %115
    %117 = vset.pattern.permute.xlu0 0
    %118 = vperm.xlu0 %117, %v45
    %v119 = vpop.permute.xlu0 %118
    %120 = vset.pattern.permute.xlu0 0
    %121 = vperm.xlu0 %120, %v46
    %v122 = vpop.permute.xlu0 %121
    %123 = vset.pattern.permute.xlu0 0
    %124 = vperm.xlu0 %123, %v47
    %v125 = vpop.permute.xlu0 %124
    %126 = vset.pattern.permute.xlu0 0
    %127 = vperm.xlu0 %126, %v48
    %v128 = vpop.permute.xlu0 %127
    %vm129 = vcmp.eq.s32.totalorder %v32, %v83
    %vm130 = vcmp.eq.s32.totalorder %v32, %v86
    %vm131 = vcmp.eq.s32.totalorder %v32, %v89
    %vm132 = vcmp.eq.s32.totalorder %v32, %v92
    %vm133 = vcmp.eq.s32.totalorder %v32, %v95
    %vm134 = vcmp.eq.s32.totalorder %v32, %v98
    %vm135 = vcmp.eq.s32.totalorder %v32, %v101
    %vm136 = vcmp.eq.s32.totalorder %v32, %v104
    %vm137 = vcmp.eq.s32.totalorder %v32, %v107
    %vm138 = vcmp.eq.s32.totalorder %v32, %v110
    %vm139 = vcmp.eq.s32.totalorder %v32, %v113
    %vm140 = vcmp.eq.s32.totalorder %v32, %v116
    %vm141 = vcmp.eq.s32.totalorder %v32, %v119
    %vm142 = vcmp.eq.s32.totalorder %v32, %v122
    %vm143 = vcmp.eq.s32.totalorder %v32, %v125
    %vm144 = vcmp.eq.s32.totalorder %v32, %v128
    %145 = vset.pattern.permute.xlu0 0
    %146 = vperm.xlu0 %145, %v65
    %v147 = vpop.permute.xlu0 %146
    %148 = vset.pattern.permute.xlu0 0
    %149 = vperm.xlu0 %148, %v66
    %v150 = vpop.permute.xlu0 %149
    %151 = vset.pattern.permute.xlu0 0
    %152 = vperm.xlu0 %151, %v67
    %v153 = vpop.permute.xlu0 %152
    %154 = vset.pattern.permute.xlu0 0
    %155 = vperm.xlu0 %154, %v68
    %v156 = vpop.permute.xlu0 %155
    %157 = vset.pattern.permute.xlu0 0
    %158 = vperm.xlu0 %157, %v69
    %v159 = vpop.permute.xlu0 %158
    %160 = vset.pattern.permute.xlu0 0
    %161 = vperm.xlu0 %160, %v70
    %v162 = vpop.permute.xlu0 %161
    %163 = vset.pattern.permute.xlu0 0
    %164 = vperm.xlu0 %163, %v71
    %v165 = vpop.permute.xlu0 %164
    %166 = vset.pattern.permute.xlu0 0
    %167 = vperm.xlu0 %166, %v72
    %v168 = vpop.permute.xlu0 %167
    %169 = vset.pattern.permute.xlu0 0
    %170 = vperm.xlu0 %169, %v73
    %v171 = vpop.permute.xlu0 %170
    %172 = vset.pattern.permute.xlu0 0
    %173 = vperm.xlu0 %172, %v74
    %v174 = vpop.permute.xlu0 %173
    %175 = vset.pattern.permute.xlu0 0
    %176 = vperm.xlu0 %175, %v75
    %v177 = vpop.permute.xlu0 %176
    %178 = vset.pattern.permute.xlu0 0
    %179 = vperm.xlu0 %178, %v76
    %v180 = vpop.permute.xlu0 %179
    %181 = vset.pattern.permute.xlu0 0
    %182 = vperm.xlu0 %181, %v77
    %v183 = vpop.permute.xlu0 %182
    %184 = vset.pattern.permute.xlu0 0
    %185 = vperm.xlu0 %184, %v78
    %v186 = vpop.permute.xlu0 %185
    %187 = vset.pattern.permute.xlu0 0
    %188 = vperm.xlu0 %187, %v79
    %v189 = vpop.permute.xlu0 %188
    %190 = vset.pattern.permute.xlu0 0
    %191 = vperm.xlu0 %190, %v80
    %v192 = vpop.permute.xlu0 %191
    %vm193 = vcmp.eq.s32.totalorder %v32, %v147
    %vm194 = vcmp.eq.s32.totalorder %v32, %v150
    %vm195 = vcmp.eq.s32.totalorder %v32, %v153
    %vm196 = vcmp.eq.s32.totalorder %v32, %v156
    %vm197 = vcmp.eq.s32.totalorder %v32, %v159
    %vm198 = vcmp.eq.s32.totalorder %v32, %v162
    %vm199 = vcmp.eq.s32.totalorder %v32, %v165
    %vm200 = vcmp.eq.s32.totalorder %v32, %v168
    %vm201 = vcmp.eq.s32.totalorder %v32, %v171
    %vm202 = vcmp.eq.s32.totalorder %v32, %v174
    %vm203 = vcmp.eq.s32.totalorder %v32, %v177
    %vm204 = vcmp.eq.s32.totalorder %v32, %v180
    %vm205 = vcmp.eq.s32.totalorder %v32, %v183
    %vm206 = vcmp.eq.s32.totalorder %v32, %v186
    %vm207 = vcmp.eq.s32.totalorder %v32, %v189
    %vm208 = vcmp.eq.s32.totalorder %v32, %v192
    %vm209 = vmor %vm129, %vm193
    %vm210 = vmor %vm130, %vm194
    %vm211 = vmor %vm131, %vm195
    %vm212 = vmor %vm132, %vm196
    %vm213 = vmor %vm133, %vm197
    %vm214 = vmor %vm134, %vm198
    %vm215 = vmor %vm135, %vm199
    %vm216 = vmor %vm136, %vm200
    %vm217 = vmor %vm137, %vm201
    %vm218 = vmor %vm138, %vm202
    %vm219 = vmor %vm139, %vm203
    %vm220 = vmor %vm140, %vm204
    %vm221 = vmor %vm141, %vm205
    %vm222 = vmor %vm142, %vm206
    %vm223 = vmor %vm143, %vm207
    %vm224 = vmor %vm144, %vm208
    %v225 = vsel %vm209, 1, 0
    %v226 = vsel %vm210, 1, 0
    %v227 = vsel %vm211, 1, 0
    %v228 = vsel %vm212, 1, 0
    %v229 = vsel %vm213, 1, 0
    %v230 = vsel %vm214, 1, 0
    %v231 = vsel %vm215, 1, 0
    %v232 = vsel %vm216, 1, 0
    %v233 = vsel %vm217, 1, 0
    %v234 = vsel %vm218, 1, 0
    %v235 = vsel %vm219, 1, 0
    %v236 = vsel %vm220, 1, 0
    %v237 = vsel %vm221, 1, 0
    %v238 = vsel %vm222, 1, 0
    %v239 = vsel %vm223, 1, 0
    %v240 = vsel %vm224, 1, 0
    %v241 = vcvt.s32.f32 %v225
    %v242 = vcvt.s32.f32 %v226
    %v243 = vcvt.s32.f32 %v227
    %v244 = vcvt.s32.f32 %v228
    %v245 = vcvt.s32.f32 %v229
    %v246 = vcvt.s32.f32 %v230
    %v247 = vcvt.s32.f32 %v231
    %v248 = vcvt.s32.f32 %v232
    %v249 = vcvt.s32.f32 %v233
    %v250 = vcvt.s32.f32 %v234
    %v251 = vcvt.s32.f32 %v235
    %v252 = vcvt.s32.f32 %v236
    %v253 = vcvt.s32.f32 %v237
    %v254 = vcvt.s32.f32 %v238
    %v255 = vcvt.s32.f32 %v239
    %v256 = vcvt.s32.f32 %v240
    %v257 = vld [vmem:[#allocation2] sm:$0xff]
    %v258 = vld [vmem:[#allocation2 + $0x8] sm:$0xff]
    %v259 = vld [vmem:[#allocation2 + $0x10] sm:$0xff]
    %v260 = vld [vmem:[#allocation2 + $0x18] sm:$0xff]
    %v261 = vld [vmem:[#allocation2 + $0x20] sm:$0xff]
    %v262 = vld [vmem:[#allocation2 + $0x28] sm:$0xff]
    %v263 = vld [vmem:[#allocation2 + $0x30] sm:$0xff]
    %v264 = vld [vmem:[#allocation2 + $0x38] sm:$0xff]
    %v265 = vld [vmem:[#allocation2 + $0x40] sm:$0xff]
    %v266 = vld [vmem:[#allocation2 + $0x48] sm:$0xff]
    %v267 = vld [vmem:[#allocation2 + $0x50] sm:$0xff]
    %v268 = vld [vmem:[#allocation2 + $0x58] sm:$0xff]
    %v269 = vld [vmem:[#allocation2 + $0x60] sm:$0xff]
    %v270 = vld [vmem:[#allocation2 + $0x68] sm:$0xff]
    %v271 = vld [vmem:[#allocation2 + $0x70] sm:$0xff]
    %v272 = vld [vmem:[#allocation2 + $0x78] sm:$0xff]
    %273 = vset.pattern.permute.xlu0 1
    %274 = vperm.xlu0 %273, %v33
    %v275 = vpop.permute.xlu0 %274
    %276 = vset.pattern.permute.xlu0 1
    %277 = vperm.xlu0 %276, %v34
    %v278 = vpop.permute.xlu0 %277
    %279 = vset.pattern.permute.xlu0 1
    %280 = vperm.xlu0 %279, %v35
    %v281 = vpop.permute.xlu0 %280
    %282 = vset.pattern.permute.xlu0 1
    %283 = vperm.xlu0 %282, %v36
    %v284 = vpop.permute.xlu0 %283
    %285 = vset.pattern.permute.xlu0 1
    %286 = vperm.xlu0 %285, %v37
    %v287 = vpop.permute.xlu0 %286
    %288 = vset.pattern.permute.xlu0 1
    %289 = vperm.xlu0 %288, %v38
    %v290 = vpop.permute.xlu0 %289
    %291 = vset.pattern.permute.xlu0 1
    %292 = vperm.xlu0 %291, %v39
    %v293 = vpop.permute.xlu0 %292
    %294 = vset.pattern.permute.xlu0 1
    %295 = vperm.xlu0 %294, %v40
    %v296 = vpop.permute.xlu0 %295
    %297 = vset.pattern.permute.xlu0 1
    %298 = vperm.xlu0 %297, %v41
    %v299 = vpop.permute.xlu0 %298
    %300 = vset.pattern.permute.xlu0 1
    %301 = vperm.xlu0 %300, %v42
    %v302 = vpop.permute.xlu0 %301
    %303 = vset.pattern.permute.xlu0 1
    %304 = vperm.xlu0 %303, %v43
    %v305 = vpop.permute.xlu0 %304
    %306 = vset.pattern.permute.xlu0 1
    %307 = vperm.xlu0 %306, %v44
    %v308 = vpop.permute.xlu0 %307
    %309 = vset.pattern.permute.xlu0 1
    %310 = vperm.xlu0 %309, %v45
    %v311 = vpop.permute.xlu0 %310
    %312 = vset.pattern.permute.xlu0 1
    %313 = vperm.xlu0 %312, %v46
    %v314 = vpop.permute.xlu0 %313
    %315 = vset.pattern.permute.xlu0 1
    %316 = vperm.xlu0 %315, %v47
    %v317 = vpop.permute.xlu0 %316
    %318 = vset.pattern.permute.xlu0 1
    %319 = vperm.xlu0 %318, %v48
    %v320 = vpop.permute.xlu0 %319
    %vm321 = vcmp.eq.s32.totalorder %v32, %v275
    %vm322 = vcmp.eq.s32.totalorder %v32, %v278
    %vm323 = vcmp.eq.s32.totalorder %v32, %v281
    %vm324 = vcmp.eq.s32.totalorder %v32, %v284
    %vm325 = vcmp.eq.s32.totalorder %v32, %v287
    %vm326 = vcmp.eq.s32.totalorder %v32, %v290
    %vm327 = vcmp.eq.s32.totalorder %v32, %v293
    %vm328 = vcmp.eq.s32.totalorder %v32, %v296
    %vm329 = vcmp.eq.s32.totalorder %v32, %v299
    %vm330 = vcmp.eq.s32.totalorder %v32, %v302
    %vm331 = vcmp.eq.s32.totalorder %v32, %v305
    %vm332 = vcmp.eq.s32.totalorder %v32, %v308
    %vm333 = vcmp.eq.s32.totalorder %v32, %v311
    %vm334 = vcmp.eq.s32.totalorder %v32, %v314
    %vm335 = vcmp.eq.s32.totalorder %v32, %v317
    %vm336 = vcmp.eq.s32.totalorder %v32, %v320
    %337 = vset.pattern.permute.xlu0 1
    %338 = vperm.xlu0 %337, %v65
    %v339 = vpop.permute.xlu0 %338
    %340 = vset.pattern.permute.xlu0 1
    %341 = vperm.xlu0 %340, %v66
    %v342 = vpop.permute.xlu0 %341
    %343 = vset.pattern.permute.xlu0 1
    %344 = vperm.xlu0 %343, %v67
    %v345 = vpop.permute.xlu0 %344
    %346 = vset.pattern.permute.xlu0 1
    %347 = vperm.xlu0 %346, %v68
    %v348 = vpop.permute.xlu0 %347
    %349 = vset.pattern.permute.xlu0 1
    %350 = vperm.xlu0 %349, %v69
    %v351 = vpop.permute.xlu0 %350
    %352 = vset.pattern.permute.xlu0 1
    %353 = vperm.xlu0 %352, %v70
    %v354 = vpop.permute.xlu0 %353
    %355 = vset.pattern.permute.xlu0 1
    %356 = vperm.xlu0 %355, %v71
    %v357 = vpop.permute.xlu0 %356
    %358 = vset.pattern.permute.xlu0 1
    %359 = vperm.xlu0 %358, %v72
    %v360 = vpop.permute.xlu0 %359
    %361 = vset.pattern.permute.xlu0 1
    %362 = vperm.xlu0 %361, %v73
    %v363 = vpop.permute.xlu0 %362
    %364 = vset.pattern.permute.xlu0 1
    %365 = vperm.xlu0 %364, %v74
    %v366 = vpop.permute.xlu0 %365
    %367 = vset.pattern.permute.xlu0 1
    %368 = vperm.xlu0 %367, %v75
    %v369 = vpop.permute.xlu0 %368
    %370 = vset.pattern.permute.xlu0 1
    %371 = vperm.xlu0 %370, %v76
    %v372 = vpop.permute.xlu0 %371
    %373 = vset.pattern.permute.xlu0 1
    %374 = vperm.xlu0 %373, %v77
    %v375 = vpop.permute.xlu0 %374
    %376 = vset.pattern.permute.xlu0 1
    %377 = vperm.xlu0 %376, %v78
    %v378 = vpop.permute.xlu0 %377
    %379 = vset.pattern.permute.xlu0 1
    %380 = vperm.xlu0 %379, %v79
    %v381 = vpop.permute.xlu0 %380
    %382 = vset.pattern.permute.xlu0 1
    %383 = vperm.xlu0 %382, %v80
    %v384 = vpop.permute.xlu0 %383
    %vm385 = vcmp.eq.s32.totalorder %v32, %v339
    %vm386 = vcmp.eq.s32.totalorder %v32, %v342
    %vm387 = vcmp.eq.s32.totalorder %v32, %v345
    %vm388 = vcmp.eq.s32.totalorder %v32, %v348
    %vm389 = vcmp.eq.s32.totalorder %v32, %v351
    %vm390 = vcmp.eq.s32.totalorder %v32, %v354
    %vm391 = vcmp.eq.s32.totalorder %v32, %v357
    %vm392 = vcmp.eq.s32.totalorder %v32, %v360
    %vm393 = vcmp.eq.s32.totalorder %v32, %v363
    %vm394 = vcmp.eq.s32.totalorder %v32, %v366
    %vm395 = vcmp.eq.s32.totalorder %v32, %v369
    %vm396 = vcmp.eq.s32.totalorder %v32, %v372
    %vm397 = vcmp.eq.s32.totalorder %v32, %v375
    %vm398 = vcmp.eq.s32.totalorder %v32, %v378
    %vm399 = vcmp.eq.s32.totalorder %v32, %v381
    %vm400 = vcmp.eq.s32.totalorder %v32, %v384
    %vm401 = vmor %vm321, %vm385
    %vm402 = vmor %vm322, %vm386
    %vm403 = vmor %vm323, %vm387
    %vm404 = vmor %vm324, %vm388
    %vm405 = vmor %vm325, %vm389
    %vm406 = vmor %vm326, %vm390
    %vm407 = vmor %vm327, %vm391
    %vm408 = vmor %vm328, %vm392
    %vm409 = vmor %vm329, %vm393
    %vm410 = vmor %vm330, %vm394
    %vm411 = vmor %vm331, %vm395
    %vm412 = vmor %vm332, %vm396
    %vm413 = vmor %vm333, %vm397
    %vm414 = vmor %vm334, %vm398
    %vm415 = vmor %vm335, %vm399
    %vm416 = vmor %vm336, %vm400
    %v417 = vsel %vm401, 1, 0
    %v418 = vsel %vm402, 1, 0
    %v419 = vsel %vm403, 1, 0
    %v420 = vsel %vm404, 1, 0
    %v421 = vsel %vm405, 1, 0
    %v422 = vsel %vm406, 1, 0
    %v423 = vsel %vm407, 1, 0
    %v424 = vsel %vm408, 1, 0
    %v425 = vsel %vm409, 1, 0
    %v426 = vsel %vm410, 1, 0
    %v427 = vsel %vm411, 1, 0
    %v428 = vsel %vm412, 1, 0
    %v429 = vsel %vm413, 1, 0
    %v430 = vsel %vm414, 1, 0
    %v431 = vsel %vm415, 1, 0
    %v432 = vsel %vm416, 1, 0
    %v433 = vcvt.s32.f32 %v417
    %v434 = vcvt.s32.f32 %v418
    %v435 = vcvt.s32.f32 %v419
    %v436 = vcvt.s32.f32 %v420
    %v437 = vcvt.s32.f32 %v421
    %v438 = vcvt.s32.f32 %v422
    %v439 = vcvt.s32.f32 %v423
    %v440 = vcvt.s32.f32 %v424
    %v441 = vcvt.s32.f32 %v425
    %v442 = vcvt.s32.f32 %v426
    %v443 = vcvt.s32.f32 %v427
    %v444 = vcvt.s32.f32 %v428
    %v445 = vcvt.s32.f32 %v429
    %v446 = vcvt.s32.f32 %v430
    %v447 = vcvt.s32.f32 %v431
    %v448 = vcvt.s32.f32 %v432
    %s449 = scalar_lea.vmem [#allocation2], 128
    %v450 = vld [vmem:[%s449] sm:$0xff]
    %v451 = vld [vmem:[%s449 + $0x8] sm:$0xff]
    %v452 = vld [vmem:[%s449 + $0x10] sm:$0xff]
    %v453 = vld [vmem:[%s449 + $0x18] sm:$0xff]
    %v454 = vld [vmem:[%s449 + $0x20] sm:$0xff]
    %v455 = vld [vmem:[%s449 + $0x28] sm:$0xff]
    %v456 = vld [vmem:[%s449 + $0x30] sm:$0xff]
    %v457 = vld [vmem:[%s449 + $0x38] sm:$0xff]
    %v458 = vld [vmem:[%s449 + $0x40] sm:$0xff]
    %v459 = vld [vmem:[%s449 + $0x48] sm:$0xff]
    %v460 = vld [vmem:[%s449 + $0x50] sm:$0xff]
    %v461 = vld [vmem:[%s449 + $0x58] sm:$0xff]
    %v462 = vld [vmem:[%s449 + $0x60] sm:$0xff]
    %v463 = vld [vmem:[%s449 + $0x68] sm:$0xff]
    %v464 = vld [vmem:[%s449 + $0x70] sm:$0xff]
    %v465 = vld [vmem:[%s449 + $0x78] sm:$0xff]
    %466 = vmatpush.msra.mxu0 %v465
    %467 = vmatpush.msra.mxu0 %v464
    %468 = vmatpush.msra.mxu0 %v463
    %469 = vmatpush.msra.mxu0 %v462
    %470 = vmatpush.msra.mxu0 %v461
    %471 = vmatpush.msra.mxu0 %v460
    %472 = vmatpush.msra.mxu0 %v459
    %473 = vmatpush.msra.mxu0 %v458
    %474 = vmatpush.msra.mxu0 %v457
    %475 = vmatpush.msra.mxu0 %v456
    %476 = vmatpush.msra.mxu0 %v455
    %477 = vmatpush.msra.mxu0 %v454
    %478 = vmatpush.msra.mxu0 %v453
    %479 = vmatpush.msra.mxu0 %v452
    %480 = vmatpush.msra.mxu0 %v451
    %481 = vmatpush.msra.mxu0 %v450
    %482 = vmatmul.f32.gmra.mxu0 %v433
    %v483 = vpop.f32.mrf.mxu0
    %v484 = vadd.f32 0.0, %v483
    %485 = vmatmul.f32.gmra.mxu0 %v434
    %v486 = vpop.f32.mrf.mxu0
    %v487 = vadd.f32 0.0, %v486
    %488 = vmatmul.f32.gmra.mxu0 %v435
    %v489 = vpop.f32.mrf.mxu0
    %v490 = vadd.f32 0.0, %v489
    %491 = vmatmul.f32.gmra.mxu0 %v436
    %v492 = vpop.f32.mrf.mxu0
    %v493 = vadd.f32 0.0, %v492
    %494 = vmatmul.f32.gmra.mxu0 %v437
    %v495 = vpop.f32.mrf.mxu0
    %v496 = vadd.f32 0.0, %v495
    %497 = vmatmul.f32.gmra.mxu0 %v438
    %v498 = vpop.f32.mrf.mxu0
    %v499 = vadd.f32 0.0, %v498
    %500 = vmatmul.f32.gmra.mxu0 %v439
    %v501 = vpop.f32.mrf.mxu0
    %v502 = vadd.f32 0.0, %v501
    %503 = vmatmul.f32.gmra.mxu0 %v440
    %v504 = vpop.f32.mrf.mxu0
    %v505 = vadd.f32 0.0, %v504
    %506 = vmatmul.f32.gmra.mxu0 %v441
    %v507 = vpop.f32.mrf.mxu0
    %v508 = vadd.f32 0.0, %v507
    %509 = vmatmul.f32.gmra.mxu0 %v442
    %v510 = vpop.f32.mrf.mxu0
    %v511 = vadd.f32 0.0, %v510
    %512 = vmatmul.f32.gmra.mxu0 %v443
    %v513 = vpop.f32.mrf.mxu0
    %v514 = vadd.f32 0.0, %v513
    %515 = vmatmul.f32.gmra.mxu0 %v444
    %v516 = vpop.f32.mrf.mxu0
    %v517 = vadd.f32 0.0, %v516
    %518 = vmatmul.f32.gmra.mxu0 %v445
    %v519 = vpop.f32.mrf.mxu0
    %v520 = vadd.f32 0.0, %v519
    %521 = vmatmul.f32.gmra.mxu0 %v446
    %v522 = vpop.f32.mrf.mxu0
    %v523 = vadd.f32 0.0, %v522
    %524 = vmatmul.f32.gmra.mxu0 %v447
    %v525 = vpop.f32.mrf.mxu0
    %v526 = vadd.f32 0.0, %v525
    %527 = vmatmul.f32.gmra.mxu0 %v448
    %v528 = vpop.f32.mrf.mxu0
    %v529 = vadd.f32 0.0, %v528
    %530 = vdwg.mxu0
    %531 = vmatpush.msra.mxu0 %v272
    %532 = vmatpush.msra.mxu0 %v271
    %533 = vmatpush.msra.mxu0 %v270
    %534 = vmatpush.msra.mxu0 %v269
    %535 = vmatpush.msra.mxu0 %v268
    %536 = vmatpush.msra.mxu0 %v267
    %537 = vmatpush.msra.mxu0 %v266
    %538 = vmatpush.msra.mxu0 %v265
    %539 = vmatpush.msra.mxu0 %v264
    %540 = vmatpush.msra.mxu0 %v263
    %541 = vmatpush.msra.mxu0 %v262
    %542 = vmatpush.msra.mxu0 %v261
    %543 = vmatpush.msra.mxu0 %v260
    %544 = vmatpush.msra.mxu0 %v259
    %545 = vmatpush.msra.mxu0 %v258
    %546 = vmatpush.msra.mxu0 %v257
    %547 = vmatmul.f32.gmra.mxu0 %v241
    %v548 = vpop.f32.mrf.mxu0
    %v549 = vadd.f32 %v484, %v548
    %550 = vmatmul.f32.gmra.mxu0 %v242
    %v551 = vpop.f32.mrf.mxu0
    %v552 = vadd.f32 %v487, %v551
    %553 = vmatmul.f32.gmra.mxu0 %v243
    %v554 = vpop.f32.mrf.mxu0
    %v555 = vadd.f32 %v490, %v554
    %556 = vmatmul.f32.gmra.mxu0 %v244
    %v557 = vpop.f32.mrf.mxu0
    %v558 = vadd.f32 %v493, %v557
    %559 = vmatmul.f32.gmra.mxu0 %v245
    %v560 = vpop.f32.mrf.mxu0
    %v561 = vadd.f32 %v496, %v560
    %562 = vmatmul.f32.gmra.mxu0 %v246
    %v563 = vpop.f32.mrf.mxu0
    %v564 = vadd.f32 %v499, %v563
    %565 = vmatmul.f32.gmra.mxu0 %v247
    %v566 = vpop.f32.mrf.mxu0
    %v567 = vadd.f32 %v502, %v566
    %568 = vmatmul.f32.gmra.mxu0 %v248
    %v569 = vpop.f32.mrf.mxu0
    %v570 = vadd.f32 %v505, %v569
    %571 = vmatmul.f32.gmra.mxu0 %v249
    %v572 = vpop.f32.mrf.mxu0
    %v573 = vadd.f32 %v508, %v572
    %574 = vmatmul.f32.gmra.mxu0 %v250
    %v575 = vpop.f32.mrf.mxu0
    %v576 = vadd.f32 %v511, %v575
    %577 = vmatmul.f32.gmra.mxu0 %v251
    %v578 = vpop.f32.mrf.mxu0
    %v579 = vadd.f32 %v514, %v578
    %580 = vmatmul.f32.gmra.mxu0 %v252
    %v581 = vpop.f32.mrf.mxu0
    %v582 = vadd.f32 %v517, %v581
    %583 = vmatmul.f32.gmra.mxu0 %v253
    %v584 = vpop.f32.mrf.mxu0
    %v585 = vadd.f32 %v520, %v584
    %586 = vmatmul.f32.gmra.mxu0 %v254
    %v587 = vpop.f32.mrf.mxu0
    %v588 = vadd.f32 %v523, %v587
    %589 = vmatmul.f32.gmra.mxu0 %v255
    %v590 = vpop.f32.mrf.mxu0
    %v591 = vadd.f32 %v526, %v590
    %592 = vmatmul.f32.gmra.mxu0 %v256
    %v593 = vpop.f32.mrf.mxu0
    %v594 = vadd.f32 %v529, %v593
    %595 = vdwg.mxu0
    %596 = vset.pattern.permute.xlu0 2
    %597 = vperm.xlu0 %596, %v33
    %v598 = vpop.permute.xlu0 %597
    %599 = vset.pattern.permute.xlu0 2
    %600 = vperm.xlu0 %599, %v34
    %v601 = vpop.permute.xlu0 %600
    %602 = vset.pattern.permute.xlu0 2
    %603 = vperm.xlu0 %602, %v35
    %v604 = vpop.permute.xlu0 %603
    %605 = vset.pattern.permute.xlu0 2
    %606 = vperm.xlu0 %605, %v36
    %v607 = vpop.permute.xlu0 %606
    %608 = vset.pattern.permute.xlu0 2
    %609 = vperm.xlu0 %608, %v37
    %v610 = vpop.permute.xlu0 %609
    %611 = vset.pattern.permute.xlu0 2
    %612 = vperm.xlu0 %611, %v38
    %v613 = vpop.permute.xlu0 %612
    %614 = vset.pattern.permute.xlu0 2
    %615 = vperm.xlu0 %614, %v39
    %v616 = vpop.permute.xlu0 %615
    %617 = vset.pattern.permute.xlu0 2
    %618 = vperm.xlu0 %617, %v40
    %v619 = vpop.permute.xlu0 %618
    %620 = vset.pattern.permute.xlu0 2
    %621 = vperm.xlu0 %620, %v41
    %v622 = vpop.permute.xlu0 %621
    %623 = vset.pattern.permute.xlu0 2
    %624 = vperm.xlu0 %623, %v42
    %v625 = vpop.permute.xlu0 %624
    %626 = vset.pattern.permute.xlu0 2
    %627 = vperm.xlu0 %626, %v43
    %v628 = vpop.permute.xlu0 %627
    %629 = vset.pattern.permute.xlu0 2
    %630 = vperm.xlu0 %629, %v44
    %v631 = vpop.permute.xlu0 %630
    %632 = vset.pattern.permute.xlu0 2
    %633 = vperm.xlu0 %632, %v45
    %v634 = vpop.permute.xlu0 %633
    %635 = vset.pattern.permute.xlu0 2
    %636 = vperm.xlu0 %635, %v46
    %v637 = vpop.permute.xlu0 %636
    %638 = vset.pattern.permute.xlu0 2
    %639 = vperm.xlu0 %638, %v47
    %v640 = vpop.permute.xlu0 %639
    %641 = vset.pattern.permute.xlu0 2
    %642 = vperm.xlu0 %641, %v48
    %v643 = vpop.permute.xlu0 %642
    %vm644 = vcmp.eq.s32.totalorder %v32, %v598
    %vm645 = vcmp.eq.s32.totalorder %v32, %v601
    %vm646 = vcmp.eq.s32.totalorder %v32, %v604
    %vm647 = vcmp.eq.s32.totalorder %v32, %v607
    %vm648 = vcmp.eq.s32.totalorder %v32, %v610
    %vm649 = vcmp.eq.s32.totalorder %v32, %v613
    %vm650 = vcmp.eq.s32.totalorder %v32, %v616
    %vm651 = vcmp.eq.s32.totalorder %v32, %v619
    %vm652 = vcmp.eq.s32.totalorder %v32, %v622
    %vm653 = vcmp.eq.s32.totalorder %v32, %v625
    %vm654 = vcmp.eq.s32.totalorder %v32, %v628
    %vm655 = vcmp.eq.s32.totalorder %v32, %v631
    %vm656 = vcmp.eq.s32.totalorder %v32, %v634
    %vm657 = vcmp.eq.s32.totalorder %v32, %v637
    %vm658 = vcmp.eq.s32.totalorder %v32, %v640
    %vm659 = vcmp.eq.s32.totalorder %v32, %v643
    %660 = vset.pattern.permute.xlu0 2
    %661 = vperm.xlu0 %660, %v65
    %v662 = vpop.permute.xlu0 %661
    %663 = vset.pattern.permute.xlu0 2
    %664 = vperm.xlu0 %663, %v66
    %v665 = vpop.permute.xlu0 %664
    %666 = vset.pattern.permute.xlu0 2
    %667 = vperm.xlu0 %666, %v67
    %v668 = vpop.permute.xlu0 %667
    %669 = vset.pattern.permute.xlu0 2
    %670 = vperm.xlu0 %669, %v68
    %v671 = vpop.permute.xlu0 %670
    %672 = vset.pattern.permute.xlu0 2
    %673 = vperm.xlu0 %672, %v69
    %v674 = vpop.permute.xlu0 %673
    %675 = vset.pattern.permute.xlu0 2
    %676 = vperm.xlu0 %675, %v70
    %v677 = vpop.permute.xlu0 %676
    %678 = vset.pattern.permute.xlu0 2
    %679 = vperm.xlu0 %678, %v71
    %v680 = vpop.permute.xlu0 %679
    %681 = vset.pattern.permute.xlu0 2
    %682 = vperm.xlu0 %681, %v72
    %v683 = vpop.permute.xlu0 %682
    %684 = vset.pattern.permute.xlu0 2
    %685 = vperm.xlu0 %684, %v73
    %v686 = vpop.permute.xlu0 %685
    %687 = vset.pattern.permute.xlu0 2
    %688 = vperm.xlu0 %687, %v74
    %v689 = vpop.permute.xlu0 %688
    %690 = vset.pattern.permute.xlu0 2
    %691 = vperm.xlu0 %690, %v75
    %v692 = vpop.permute.xlu0 %691
    %693 = vset.pattern.permute.xlu0 2
    %694 = vperm.xlu0 %693, %v76
    %v695 = vpop.permute.xlu0 %694
    %696 = vset.pattern.permute.xlu0 2
    %697 = vperm.xlu0 %696, %v77
    %v698 = vpop.permute.xlu0 %697
    %699 = vset.pattern.permute.xlu0 2
    %700 = vperm.xlu0 %699, %v78
    %v701 = vpop.permute.xlu0 %700
    %702 = vset.pattern.permute.xlu0 2
    %703 = vperm.xlu0 %702, %v79
    %v704 = vpop.permute.xlu0 %703
    %705 = vset.pattern.permute.xlu0 2
    %706 = vperm.xlu0 %705, %v80
    %v707 = vpop.permute.xlu0 %706
    %vm708 = vcmp.eq.s32.totalorder %v32, %v662
    %vm709 = vcmp.eq.s32.totalorder %v32, %v665
    %vm710 = vcmp.eq.s32.totalorder %v32, %v668
    %vm711 = vcmp.eq.s32.totalorder %v32, %v671
    %vm712 = vcmp.eq.s32.totalorder %v32, %v674
    %vm713 = vcmp.eq.s32.totalorder %v32, %v677
    %vm714 = vcmp.eq.s32.totalorder %v32, %v680
    %vm715 = vcmp.eq.s32.totalorder %v32, %v683
    %vm716 = vcmp.eq.s32.totalorder %v32, %v686
    %vm717 = vcmp.eq.s32.totalorder %v32, %v689
    %vm718 = vcmp.eq.s32.totalorder %v32, %v692
    %vm719 = vcmp.eq.s32.totalorder %v32, %v695
    %vm720 = vcmp.eq.s32.totalorder %v32, %v698
    %vm721 = vcmp.eq.s32.totalorder %v32, %v701
    %vm722 = vcmp.eq.s32.totalorder %v32, %v704
    %vm723 = vcmp.eq.s32.totalorder %v32, %v707
    %vm724 = vmor %vm644, %vm708
    %vm725 = vmor %vm645, %vm709
    %vm726 = vmor %vm646, %vm710
    %vm727 = vmor %vm647, %vm711
    %vm728 = vmor %vm648, %vm712
    %vm729 = vmor %vm649, %vm713
    %vm730 = vmor %vm650, %vm714
    %vm731 = vmor %vm651, %vm715
    %vm732 = vmor %vm652, %vm716
    %vm733 = vmor %vm653, %vm717
    %vm734 = vmor %vm654, %vm718
    %vm735 = vmor %vm655, %vm719
    %vm736 = vmor %vm656, %vm720
    %vm737 = vmor %vm657, %vm721
    %vm738 = vmor %vm658, %vm722
    %vm739 = vmor %vm659, %vm723
    %v740 = vsel %vm724, 1, 0
    %v741 = vsel %vm725, 1, 0
    %v742 = vsel %vm726, 1, 0
    %v743 = vsel %vm727, 1, 0
    %v744 = vsel %vm728, 1, 0
    %v745 = vsel %vm729, 1, 0
    %v746 = vsel %vm730, 1, 0
    %v747 = vsel %vm731, 1, 0
    %v748 = vsel %vm732, 1, 0
    %v749 = vsel %vm733, 1, 0
    %v750 = vsel %vm734, 1, 0
    %v751 = vsel %vm735, 1, 0
    %v752 = vsel %vm736, 1, 0
    %v753 = vsel %vm737, 1, 0
    %v754 = vsel %vm738, 1, 0
    %v755 = vsel %vm739, 1, 0
    %v756 = vcvt.s32.f32 %v740
    %v757 = vcvt.s32.f32 %v741
    %v758 = vcvt.s32.f32 %v742
    %v759 = vcvt.s32.f32 %v743
    %v760 = vcvt.s32.f32 %v744
    %v761 = vcvt.s32.f32 %v745
    %v762 = vcvt.s32.f32 %v746
    %v763 = vcvt.s32.f32 %v747
    %v764 = vcvt.s32.f32 %v748
    %v765 = vcvt.s32.f32 %v749
    %v766 = vcvt.s32.f32 %v750
    %v767 = vcvt.s32.f32 %v751
    %v768 = vcvt.s32.f32 %v752
    %v769 = vcvt.s32.f32 %v753
    %v770 = vcvt.s32.f32 %v754
    %v771 = vcvt.s32.f32 %v755
    %s772 = scalar_lea.vmem [#allocation2], 256
    %v773 = vld [vmem:[%s772] sm:$0xff]
    %v774 = vld [vmem:[%s772 + $0x8] sm:$0xff]
    %v775 = vld [vmem:[%s772 + $0x10] sm:$0xff]
    %v776 = vld [vmem:[%s772 + $0x18] sm:$0xff]
    %v777 = vld [vmem:[%s772 + $0x20] sm:$0xff]
    %v778 = vld [vmem:[%s772 + $0x28] sm:$0xff]
    %v779 = vld [vmem:[%s772 + $0x30] sm:$0xff]
    %v780 = vld [vmem:[%s772 + $0x38] sm:$0xff]
    %v781 = vld [vmem:[%s772 + $0x40] sm:$0xff]
    %v782 = vld [vmem:[%s772 + $0x48] sm:$0xff]
    %v783 = vld [vmem:[%s772 + $0x50] sm:$0xff]
    %v784 = vld [vmem:[%s772 + $0x58] sm:$0xff]
    %v785 = vld [vmem:[%s772 + $0x60] sm:$0xff]
    %v786 = vld [vmem:[%s772 + $0x68] sm:$0xff]
    %v787 = vld [vmem:[%s772 + $0x70] sm:$0xff]
    %v788 = vld [vmem:[%s772 + $0x78] sm:$0xff]
    %789 = vmatpush.msra.mxu0 %v788
    %790 = vmatpush.msra.mxu0 %v787
    %791 = vmatpush.msra.mxu0 %v786
    %792 = vmatpush.msra.mxu0 %v785
    %793 = vmatpush.msra.mxu0 %v784
    %794 = vmatpush.msra.mxu0 %v783
    %795 = vmatpush.msra.mxu0 %v782
    %796 = vmatpush.msra.mxu0 %v781
    %797 = vmatpush.msra.mxu0 %v780
    %798 = vmatpush.msra.mxu0 %v779
    %799 = vmatpush.msra.mxu0 %v778
    %800 = vmatpush.msra.mxu0 %v777
    %801 = vmatpush.msra.mxu0 %v776
    %802 = vmatpush.msra.mxu0 %v775
    %803 = vmatpush.msra.mxu0 %v774
    %804 = vmatpush.msra.mxu0 %v773
    %805 = vmatmul.f32.gmra.mxu0 %v756
    %v806 = vpop.f32.mrf.mxu0
    %v807 = vadd.f32 0.0, %v806
    %808 = vmatmul.f32.gmra.mxu0 %v757
    %v809 = vpop.f32.mrf.mxu0
    %v810 = vadd.f32 0.0, %v809
    %811 = vmatmul.f32.gmra.mxu0 %v758
    %v812 = vpop.f32.mrf.mxu0
    %v813 = vadd.f32 0.0, %v812
    %814 = vmatmul.f32.gmra.mxu0 %v759
    %v815 = vpop.f32.mrf.mxu0
    %v816 = vadd.f32 0.0, %v815
    %817 = vmatmul.f32.gmra.mxu0 %v760
    %v818 = vpop.f32.mrf.mxu0
    %v819 = vadd.f32 0.0, %v818
    %820 = vmatmul.f32.gmra.mxu0 %v761
    %v821 = vpop.f32.mrf.mxu0
    %v822 = vadd.f32 0.0, %v821
    %823 = vmatmul.f32.gmra.mxu0 %v762
    %v824 = vpop.f32.mrf.mxu0
    %v825 = vadd.f32 0.0, %v824
    %826 = vmatmul.f32.gmra.mxu0 %v763
    %v827 = vpop.f32.mrf.mxu0
    %v828 = vadd.f32 0.0, %v827
    %829 = vmatmul.f32.gmra.mxu0 %v764
    %v830 = vpop.f32.mrf.mxu0
    %v831 = vadd.f32 0.0, %v830
    %832 = vmatmul.f32.gmra.mxu0 %v765
    %v833 = vpop.f32.mrf.mxu0
    %v834 = vadd.f32 0.0, %v833
    %835 = vmatmul.f32.gmra.mxu0 %v766
    %v836 = vpop.f32.mrf.mxu0
    %v837 = vadd.f32 0.0, %v836
    %838 = vmatmul.f32.gmra.mxu0 %v767
    %v839 = vpop.f32.mrf.mxu0
    %v840 = vadd.f32 0.0, %v839
    %841 = vmatmul.f32.gmra.mxu0 %v768
    %v842 = vpop.f32.mrf.mxu0
    %v843 = vadd.f32 0.0, %v842
    %844 = vmatmul.f32.gmra.mxu0 %v769
    %v845 = vpop.f32.mrf.mxu0
    %v846 = vadd.f32 0.0, %v845
    %847 = vmatmul.f32.gmra.mxu0 %v770
    %v848 = vpop.f32.mrf.mxu0
    %v849 = vadd.f32 0.0, %v848
    %850 = vmatmul.f32.gmra.mxu0 %v771
    %v851 = vpop.f32.mrf.mxu0
    %v852 = vadd.f32 0.0, %v851
    %853 = vdwg.mxu0
    %v854 = vadd.f32 %v549, %v807
    %v855 = vadd.f32 %v552, %v810
    %v856 = vadd.f32 %v555, %v813
    %v857 = vadd.f32 %v558, %v816
    %v858 = vadd.f32 %v561, %v819
    %v859 = vadd.f32 %v564, %v822
    %v860 = vadd.f32 %v567, %v825
    %v861 = vadd.f32 %v570, %v828
    %v862 = vadd.f32 %v573, %v831
    %v863 = vadd.f32 %v576, %v834
    %v864 = vadd.f32 %v579, %v837
    %v865 = vadd.f32 %v582, %v840
    %v866 = vadd.f32 %v585, %v843
    %v867 = vadd.f32 %v588, %v846
    %v868 = vadd.f32 %v591, %v849
    %v869 = vadd.f32 %v594, %v852
    %870 = vset.pattern.permute.xlu0 3
    %871 = vperm.xlu0 %870, %v33
    %v872 = vpop.permute.xlu0 %871
    %873 = vset.pattern.permute.xlu0 3
    %874 = vperm.xlu0 %873, %v34
    %v875 = vpop.permute.xlu0 %874
    %876 = vset.pattern.permute.xlu0 3
    %877 = vperm.xlu0 %876, %v35
    %v878 = vpop.permute.xlu0 %877
    %879 = vset.pattern.permute.xlu0 3
    %880 = vperm.xlu0 %879, %v36
    %v881 = vpop.permute.xlu0 %880
    %882 = vset.pattern.permute.xlu0 3
    %883 = vperm.xlu0 %882, %v37
    %v884 = vpop.permute.xlu0 %883
    %885 = vset.pattern.permute.xlu0 3
    %886 = vperm.xlu0 %885, %v38
    %v887 = vpop.permute.xlu0 %886
    %888 = vset.pattern.permute.xlu0 3
    %889 = vperm.xlu0 %888, %v39
    %v890 = vpop.permute.xlu0 %889
    %891 = vset.pattern.permute.xlu0 3
    %892 = vperm.xlu0 %891, %v40
    %v893 = vpop.permute.xlu0 %892
    %894 = vset.pattern.permute.xlu0 3
    %895 = vperm.xlu0 %894, %v41
    %v896 = vpop.permute.xlu0 %895
    %897 = vset.pattern.permute.xlu0 3
    %898 = vperm.xlu0 %897, %v42
    %v899 = vpop.permute.xlu0 %898
    %900 = vset.pattern.permute.xlu0 3
    %901 = vperm.xlu0 %900, %v43
    %v902 = vpop.permute.xlu0 %901
    %903 = vset.pattern.permute.xlu0 3
    %904 = vperm.xlu0 %903, %v44
    %v905 = vpop.permute.xlu0 %904
    %906 = vset.pattern.permute.xlu0 3
    %907 = vperm.xlu0 %906, %v45
    %v908 = vpop.permute.xlu0 %907
    %909 = vset.pattern.permute.xlu0 3
    %910 = vperm.xlu0 %909, %v46
    %v911 = vpop.permute.xlu0 %910
    %912 = vset.pattern.permute.xlu0 3
    %913 = vperm.xlu0 %912, %v47
    %v914 = vpop.permute.xlu0 %913
    %915 = vset.pattern.permute.xlu0 3
    %916 = vperm.xlu0 %915, %v48
    %v917 = vpop.permute.xlu0 %916
    %vm918 = vcmp.eq.s32.totalorder %v32, %v872
    %vm919 = vcmp.eq.s32.totalorder %v32, %v875
    %vm920 = vcmp.eq.s32.totalorder %v32, %v878
    %vm921 = vcmp.eq.s32.totalorder %v32, %v881
    %vm922 = vcmp.eq.s32.totalorder %v32, %v884
    %vm923 = vcmp.eq.s32.totalorder %v32, %v887
    %vm924 = vcmp.eq.s32.totalorder %v32, %v890
    %vm925 = vcmp.eq.s32.totalorder %v32, %v893
    %vm926 = vcmp.eq.s32.totalorder %v32, %v896
    %vm927 = vcmp.eq.s32.totalorder %v32, %v899
    %vm928 = vcmp.eq.s32.totalorder %v32, %v902
    %vm929 = vcmp.eq.s32.totalorder %v32, %v905
    %vm930 = vcmp.eq.s32.totalorder %v32, %v908
    %vm931 = vcmp.eq.s32.totalorder %v32, %v911
    %vm932 = vcmp.eq.s32.totalorder %v32, %v914
    %vm933 = vcmp.eq.s32.totalorder %v32, %v917
    %934 = vset.pattern.permute.xlu0 3
    %935 = vperm.xlu0 %934, %v65
    %v936 = vpop.permute.xlu0 %935
    %937 = vset.pattern.permute.xlu0 3
    %938 = vperm.xlu0 %937, %v66
    %v939 = vpop.permute.xlu0 %938
    %940 = vset.pattern.permute.xlu0 3
    %941 = vperm.xlu0 %940, %v67
    %v942 = vpop.permute.xlu0 %941
    %943 = vset.pattern.permute.xlu0 3
    %944 = vperm.xlu0 %943, %v68
    %v945 = vpop.permute.xlu0 %944
    %946 = vset.pattern.permute.xlu0 3
    %947 = vperm.xlu0 %946, %v69
    %v948 = vpop.permute.xlu0 %947
    %949 = vset.pattern.permute.xlu0 3
    %950 = vperm.xlu0 %949, %v70
    %v951 = vpop.permute.xlu0 %950
    %952 = vset.pattern.permute.xlu0 3
    %953 = vperm.xlu0 %952, %v71
    %v954 = vpop.permute.xlu0 %953
    %955 = vset.pattern.permute.xlu0 3
    %956 = vperm.xlu0 %955, %v72
    %v957 = vpop.permute.xlu0 %956
    %958 = vset.pattern.permute.xlu0 3
    %959 = vperm.xlu0 %958, %v73
    %v960 = vpop.permute.xlu0 %959
    %961 = vset.pattern.permute.xlu0 3
    %962 = vperm.xlu0 %961, %v74
    %v963 = vpop.permute.xlu0 %962
    %964 = vset.pattern.permute.xlu0 3
    %965 = vperm.xlu0 %964, %v75
    %v966 = vpop.permute.xlu0 %965
    %967 = vset.pattern.permute.xlu0 3
    %968 = vperm.xlu0 %967, %v76
    %v969 = vpop.permute.xlu0 %968
    %970 = vset.pattern.permute.xlu0 3
    %971 = vperm.xlu0 %970, %v77
    %v972 = vpop.permute.xlu0 %971
    %973 = vset.pattern.permute.xlu0 3
    %974 = vperm.xlu0 %973, %v78
    %v975 = vpop.permute.xlu0 %974
    %976 = vset.pattern.permute.xlu0 3
    %977 = vperm.xlu0 %976, %v79
    %v978 = vpop.permute.xlu0 %977
    %979 = vset.pattern.permute.xlu0 3
    %980 = vperm.xlu0 %979, %v80
    %v981 = vpop.permute.xlu0 %980
    %vm982 = vcmp.eq.s32.totalorder %v32, %v936
    %vm983 = vcmp.eq.s32.totalorder %v32, %v939
    %vm984 = vcmp.eq.s32.totalorder %v32, %v942
    %vm985 = vcmp.eq.s32.totalorder %v32, %v945
    %vm986 = vcmp.eq.s32.totalorder %v32, %v948
    %vm987 = vcmp.eq.s32.totalorder %v32, %v951
    %vm988 = vcmp.eq.s32.totalorder %v32, %v954
    %vm989 = vcmp.eq.s32.totalorder %v32, %v957
    %vm990 = vcmp.eq.s32.totalorder %v32, %v960
    %vm991 = vcmp.eq.s32.totalorder %v32, %v963
    %vm992 = vcmp.eq.s32.totalorder %v32, %v966
    %vm993 = vcmp.eq.s32.totalorder %v32, %v969
    %vm994 = vcmp.eq.s32.totalorder %v32, %v972
    %vm995 = vcmp.eq.s32.totalorder %v32, %v975
    %vm996 = vcmp.eq.s32.totalorder %v32, %v978
    %vm997 = vcmp.eq.s32.totalorder %v32, %v981
    %vm998 = vmor %vm918, %vm982
    %vm999 = vmor %vm919, %vm983
    %vm1000 = vmor %vm920, %vm984
    %vm1001 = vmor %vm921, %vm985
    %vm1002 = vmor %vm922, %vm986
    %vm1003 = vmor %vm923, %vm987
    %vm1004 = vmor %vm924, %vm988
    %vm1005 = vmor %vm925, %vm989
    %vm1006 = vmor %vm926, %vm990
    %vm1007 = vmor %vm927, %vm991
    %vm1008 = vmor %vm928, %vm992
    %vm1009 = vmor %vm929, %vm993
    %vm1010 = vmor %vm930, %vm994
    %vm1011 = vmor %vm931, %vm995
    %vm1012 = vmor %vm932, %vm996
    %vm1013 = vmor %vm933, %vm997
    %v1014 = vsel %vm998, 1, 0
    %v1015 = vsel %vm999, 1, 0
    %v1016 = vsel %vm1000, 1, 0
    %v1017 = vsel %vm1001, 1, 0
    %v1018 = vsel %vm1002, 1, 0
    %v1019 = vsel %vm1003, 1, 0
    %v1020 = vsel %vm1004, 1, 0
    %v1021 = vsel %vm1005, 1, 0
    %v1022 = vsel %vm1006, 1, 0
    %v1023 = vsel %vm1007, 1, 0
    %v1024 = vsel %vm1008, 1, 0
    %v1025 = vsel %vm1009, 1, 0
    %v1026 = vsel %vm1010, 1, 0
    %v1027 = vsel %vm1011, 1, 0
    %v1028 = vsel %vm1012, 1, 0
    %v1029 = vsel %vm1013, 1, 0
    %v1030 = vcvt.s32.f32 %v1014
    %v1031 = vcvt.s32.f32 %v1015
    %v1032 = vcvt.s32.f32 %v1016
    %v1033 = vcvt.s32.f32 %v1017
    %v1034 = vcvt.s32.f32 %v1018
    %v1035 = vcvt.s32.f32 %v1019
    %v1036 = vcvt.s32.f32 %v1020
    %v1037 = vcvt.s32.f32 %v1021
    %v1038 = vcvt.s32.f32 %v1022
    %v1039 = vcvt.s32.f32 %v1023
    %v1040 = vcvt.s32.f32 %v1024
    %v1041 = vcvt.s32.f32 %v1025
    %v1042 = vcvt.s32.f32 %v1026
    %v1043 = vcvt.s32.f32 %v1027
    %v1044 = vcvt.s32.f32 %v1028
    %v1045 = vcvt.s32.f32 %v1029
    %s1046 = scalar_lea.vmem [#allocation2], 384
    %v1047 = vld [vmem:[%s1046] sm:$0xff]
    %v1048 = vld [vmem:[%s1046 + $0x8] sm:$0xff]
    %v1049 = vld [vmem:[%s1046 + $0x10] sm:$0xff]
    %v1050 = vld [vmem:[%s1046 + $0x18] sm:$0xff]
    %v1051 = vld [vmem:[%s1046 + $0x20] sm:$0xff]
    %v1052 = vld [vmem:[%s1046 + $0x28] sm:$0xff]
    %v1053 = vld [vmem:[%s1046 + $0x30] sm:$0xff]
    %v1054 = vld [vmem:[%s1046 + $0x38] sm:$0xff]
    %v1055 = vld [vmem:[%s1046 + $0x40] sm:$0xff]
    %v1056 = vld [vmem:[%s1046 + $0x48] sm:$0xff]
    %v1057 = vld [vmem:[%s1046 + $0x50] sm:$0xff]
    %v1058 = vld [vmem:[%s1046 + $0x58] sm:$0xff]
    %v1059 = vld [vmem:[%s1046 + $0x60] sm:$0xff]
    %v1060 = vld [vmem:[%s1046 + $0x68] sm:$0xff]
    %v1061 = vld [vmem:[%s1046 + $0x70] sm:$0xff]
    %v1062 = vld [vmem:[%s1046 + $0x78] sm:$0xff]
    %1063 = vmatpush.msra.mxu0 %v1062
    %1064 = vmatpush.msra.mxu0 %v1061
    %1065 = vmatpush.msra.mxu0 %v1060
    %1066 = vmatpush.msra.mxu0 %v1059
    %1067 = vmatpush.msra.mxu0 %v1058
    %1068 = vmatpush.msra.mxu0 %v1057
    %1069 = vmatpush.msra.mxu0 %v1056
    %1070 = vmatpush.msra.mxu0 %v1055
    %1071 = vmatpush.msra.mxu0 %v1054
    %1072 = vmatpush.msra.mxu0 %v1053
    %1073 = vmatpush.msra.mxu0 %v1052
    %1074 = vmatpush.msra.mxu0 %v1051
    %1075 = vmatpush.msra.mxu0 %v1050
    %1076 = vmatpush.msra.mxu0 %v1049
    %1077 = vmatpush.msra.mxu0 %v1048
    %1078 = vmatpush.msra.mxu0 %v1047
    %1079 = vmatmul.f32.gmra.mxu0 %v1030
    %v1080 = vpop.f32.mrf.mxu0
    %v1081 = vadd.f32 0.0, %v1080
    %1082 = vmatmul.f32.gmra.mxu0 %v1031
    %v1083 = vpop.f32.mrf.mxu0
    %v1084 = vadd.f32 0.0, %v1083
    %1085 = vmatmul.f32.gmra.mxu0 %v1032
    %v1086 = vpop.f32.mrf.mxu0
    %v1087 = vadd.f32 0.0, %v1086
    %1088 = vmatmul.f32.gmra.mxu0 %v1033
    %v1089 = vpop.f32.mrf.mxu0
    %v1090 = vadd.f32 0.0, %v1089
    %1091 = vmatmul.f32.gmra.mxu0 %v1034
    %v1092 = vpop.f32.mrf.mxu0
    %v1093 = vadd.f32 0.0, %v1092
    %1094 = vmatmul.f32.gmra.mxu0 %v1035
    %v1095 = vpop.f32.mrf.mxu0
    %v1096 = vadd.f32 0.0, %v1095
    %1097 = vmatmul.f32.gmra.mxu0 %v1036
    %v1098 = vpop.f32.mrf.mxu0
    %v1099 = vadd.f32 0.0, %v1098
    %1100 = vmatmul.f32.gmra.mxu0 %v1037
    %v1101 = vpop.f32.mrf.mxu0
    %v1102 = vadd.f32 0.0, %v1101
    %1103 = vmatmul.f32.gmra.mxu0 %v1038
    %v1104 = vpop.f32.mrf.mxu0
    %v1105 = vadd.f32 0.0, %v1104
    %1106 = vmatmul.f32.gmra.mxu0 %v1039
    %v1107 = vpop.f32.mrf.mxu0
    %v1108 = vadd.f32 0.0, %v1107
    %1109 = vmatmul.f32.gmra.mxu0 %v1040
    %v1110 = vpop.f32.mrf.mxu0
    %v1111 = vadd.f32 0.0, %v1110
    %1112 = vmatmul.f32.gmra.mxu0 %v1041
    %v1113 = vpop.f32.mrf.mxu0
    %v1114 = vadd.f32 0.0, %v1113
    %1115 = vmatmul.f32.gmra.mxu0 %v1042
    %v1116 = vpop.f32.mrf.mxu0
    %v1117 = vadd.f32 0.0, %v1116
    %1118 = vmatmul.f32.gmra.mxu0 %v1043
    %v1119 = vpop.f32.mrf.mxu0
    %v1120 = vadd.f32 0.0, %v1119
    %1121 = vmatmul.f32.gmra.mxu0 %v1044
    %v1122 = vpop.f32.mrf.mxu0
    %v1123 = vadd.f32 0.0, %v1122
    %1124 = vmatmul.f32.gmra.mxu0 %v1045
    %v1125 = vpop.f32.mrf.mxu0
    %v1126 = vadd.f32 0.0, %v1125
    %1127 = vdwg.mxu0
    %v1128 = vadd.f32 %v854, %v1081
    %v1129 = vadd.f32 %v855, %v1084
    %v1130 = vadd.f32 %v856, %v1087
    %v1131 = vadd.f32 %v857, %v1090
    %v1132 = vadd.f32 %v858, %v1093
    %v1133 = vadd.f32 %v859, %v1096
    %v1134 = vadd.f32 %v860, %v1099
    %v1135 = vadd.f32 %v861, %v1102
    %v1136 = vadd.f32 %v862, %v1105
    %v1137 = vadd.f32 %v863, %v1108
    %v1138 = vadd.f32 %v864, %v1111
    %v1139 = vadd.f32 %v865, %v1114
    %v1140 = vadd.f32 %v866, %v1117
    %v1141 = vadd.f32 %v867, %v1120
    %v1142 = vadd.f32 %v868, %v1123
    %v1143 = vadd.f32 %v869, %v1126
    %1144 = vst [vmem:[#allocation5] sm:$0xff] %v1128
    %1145 = vst [vmem:[#allocation5 + $0x8] sm:$0xff] %v1129
    %1146 = vst [vmem:[#allocation5 + $0x10] sm:$0xff] %v1130
    %1147 = vst [vmem:[#allocation5 + $0x18] sm:$0xff] %v1131
    %1148 = vst [vmem:[#allocation5 + $0x20] sm:$0xff] %v1132
    %1149 = vst [vmem:[#allocation5 + $0x28] sm:$0xff] %v1133
    %1150 = vst [vmem:[#allocation5 + $0x30] sm:$0xff] %v1134
    %1151 = vst [vmem:[#allocation5 + $0x38] sm:$0xff] %v1135
    %1152 = vst [vmem:[#allocation5 + $0x40] sm:$0xff] %v1136
    %1153 = vst [vmem:[#allocation5 + $0x48] sm:$0xff] %v1137
    %1154 = vst [vmem:[#allocation5 + $0x50] sm:$0xff] %v1138
    %1155 = vst [vmem:[#allocation5 + $0x58] sm:$0xff] %v1139
    %1156 = vst [vmem:[#allocation5 + $0x60] sm:$0xff] %v1140
    %1157 = vst [vmem:[#allocation5 + $0x68] sm:$0xff] %v1141
    %1158 = vst [vmem:[#allocation5 + $0x70] sm:$0xff] %v1142
    %1159 = vst [vmem:[#allocation5 + $0x78] sm:$0xff] %v1143
    // Predicated region
    $region18: #{tpu_custom_call.1} parent=1 // pred_check
      _
    $region19: #{tpu_custom_call.1} parent=1 // pred_check_branch
      %1161 = sbr.rel (0) target = $region21
    $region20: #{tpu_custom_call.1} parent=1 // pred_region
      %1163 = vsyncadd [#allocation4], 0
      %s1164 = sshll.u32 [#allocation5], 4
      %s1165 = int_to_ptr.vmem [resolvable:$true] %s1164
      %s1166 = sshll.u32 %s3, 4
      %s1167 = int_to_ptr.hbm [resolvable:$true] %s1166
      %1172 = dma.vmem_to_hbm [thread:$0]  %s1165, 2048, %s1167, [#allocation4], 128, 128, 8
    $region21: #{tpu_custom_call.1} parent=1 // pred_fallthru
      _
    // Predicated region
    $region22: #{tpu_custom_call.1} parent=1 // pred_check
      _
    $region23: #{tpu_custom_call.1} parent=1 // pred_check_branch
      %1174 = sbr.rel (0) target = $region25
    $region24: #{tpu_custom_call.1} parent=1 // pred_region
      %1176 = dma.done [#allocation4], 2048
    $region25: #{tpu_custom_call.1} parent=1 // pred_fallthru
      _
    %1177 = vsyncpa [#allocation3], 1
    %1178 = vsyncpa [#allocation4], 1

</llo_original>
